<compile_context>
chip_gen: v7x
topology: tpu7x:2x2x1
jax: 0.10.0
libtpu: 0.0.40
codegen_flags: <defaults>
</compile_context>

<pallas_src>
import functools

import jax
import jax.numpy as jnp
from jax.experimental import pallas as pl
from jax.experimental.pallas import tpu as pltpu


_LANES = 128
_ROW_ALIGN = 32                       # sublane alignment safe for int8/bf16/f32 tiles
_SAMPLE_ALIGN = _ROW_ALIGN * _LANES   # 4096 samples


def _cdiv(a, b):
    return (a + b - 1) // b


def _round_up(x, m):
    return _cdiv(x, m) * m


def _wpl_kernel(z_ref, y_ref, out_ref, *, w01, w02, w12, n, rb, num_blocks):
    """One block of rb * 128 samples.

    z_ref  : (3, rb, 128) f32/bf16 VMEM   (class, sublane-row, lane)
    y_ref  : (rb, 128)    int8 VMEM       labels in {0, 1, 2}
    out_ref: (1, 128)     f32 VMEM        per-lane partial sums for this block
    """
    i = pl.program_id(0)

    z0 = z_ref[0].astype(jnp.float32)         # (rb, 128)
    z1 = z_ref[1].astype(jnp.float32)
    z2 = z_ref[2].astype(jnp.float32)
    y = y_ref[...].astype(jnp.int32)          # (rb, 128)

    def logaddexp(a, b):
        m = jnp.maximum(a, b)
        d = jnp.minimum(a, b) - m             # <= 0 -> exp never overflows (EUP)
        return m + jnp.log(1.0 + jnp.exp(d))

    l01 = logaddexp(z0, z1)
    l02 = logaddexp(z0, z2)
    l12 = logaddexp(z1, z2)

    # Select-then-compute: build per-sample operands first, then evaluate a
    # single weighted pair instead of all three WPL rows (saves VALU ops).
    is0 = y == 0
    is1 = y == 1
    le1 = y <= 1
    z_y = jnp.where(is0, z0, jnp.where(is1, z1, z2))
    l_a = jnp.where(le1, l01, l02)
    l_b = jnp.where(is0, l02, l12)
    w_a = jnp.where(le1, jnp.float32(w01), jnp.float32(w02))
    w_b = jnp.where(is0, jnp.float32(w02), jnp.float32(w12))
    # log(e_i / (e_i + e_j)) = z_i - logaddexp(z_i, z_j)
    picked = w_a * (z_y - l_a) + w_b * (z_y - l_b)            # (rb, 128)

    # Sublane-only reduction; wrapper finishes the (tiny) lane/block reduction.
    out_ref[...] = jnp.sum(picked, axis=0, keepdims=True)     # (1, 128)

    bn = rb * _LANES
    if n % bn != 0:
        # Only the last block can contain zero-padded samples or ragged-DMA
        # garbage; recompute its partial with the tail mask.  All other blocks
        # skip this branch at runtime.
        @pl.when(i == num_blocks - 1)
        def _():
            row = jax.lax.broadcasted_iota(jnp.int32, (rb, _LANES), 0)
            lane = jax.lax.broadcasted_iota(jnp.int32, (rb, _LANES), 1)
            in_block_idx = row * _LANES + lane
            rem = n - (num_blocks - 1) * bn       # static int, 0 < rem < bn
            masked = jnp.where(in_block_idx < rem, picked, 0.0)
            out_ref[...] = jnp.sum(masked, axis=0, keepdims=True)


def wpl_loss(z, y, weights=(1.0, 1.0, 0.1), block_n=262144):
    """z: (N, 3) float logits (f32 or bf16); y: (N,) int labels in {0,1,2}."""
    w = tuple(float(x) for x in weights)
    return _wpl_loss_jit(z, y, w, int(block_n))


@functools.partial(jax.jit, static_argnums=(2, 3))
def _wpl_loss_jit(z, y, weights, block_n):
    n, c = z.shape
    assert c == 3, "WPL_loss expects 3 classes"

    n_pad = _round_up(n, _SAMPLE_ALIGN)           # minimal pad to (32,128) tiles
    r = n_pad // _LANES                           # rows; multiple of 32

    # Rows per block: multiple of 32, ~block_n samples, but keep >= 2 blocks so
    # both v7x TensorCores get work ('parallel' grid axis).  Per-block VMEM at
    # rb=2048 is ~3 MiB (f32 z) + 256 KiB (i8 y), x2 buffers -> well inside the
    # default scoped VMEM on every generation.
    rb_target = max(_ROW_ALIGN, _round_up(block_n, _SAMPLE_ALIGN) // _LANES)
    rb_half = max(_ROW_ALIGN, _round_up(_cdiv(r, 2), _ROW_ALIGN))
    rb = min(rb_target, rb_half, r)
    g = _cdiv(r, rb)

    # Lane-dense layout: classes on the leading axis, samples fill sublanes AND
    # lanes.  Under jit the transpose + pad + reshape fuse into one copy.
    # TODO(synk): ideally the producing matmul emits class-major (3, R, 128)
    # logits directly so this copy disappears entirely.
    z_t = jnp.pad(jnp.transpose(z), ((0, 0), (0, n_pad - n)))
    z_r = z_t.reshape(3, r, _LANES)
    y_r = jnp.pad(y.astype(jnp.int8), (0, n_pad - n)).reshape(r, _LANES)

    kernel = functools.partial(
        _wpl_kernel,
        w01=weights[0], w02=weights[1], w12=weights[2],
        n=n, rb=rb, num_blocks=g,
    )

    partials = pl.pallas_call(
        kernel,
        out_shape=jax.ShapeDtypeStruct((1, _LANES * g), jnp.float32),
        grid=(g,),
        in_specs=[
            pl.BlockSpec((3, rb, _LANES), lambda i: (0, i, 0)),
            pl.BlockSpec((rb, _LANES), lambda i: (i, 0)),
        ],
        out_specs=pl.BlockSpec((1, _LANES), lambda i: (0, i)),
        compiler_params=pltpu.CompilerParams(
            dimension_semantics=("parallel",)),
    )(z_r, y_r)

    return -jnp.sum(partials) / jnp.float32(n)


def _reference_wpl_loss(z, y, weights=(1.0, 1.0, 0.1)):
    """Pure-JAX reference mirroring the PyTorch forward (exp/div/log form)."""
    w01, w02, w12 = weights
    exp_z = jnp.exp(z.astype(jnp.float32))
    e0, e1, e2 = exp_z[:, 0], exp_z[:, 1], exp_z[:, 2]
    s01, s02, s12 = e0 + e1, e0 + e2, e1 + e2
    wpl0 = w01 * jnp.log(e0 / s01) + w02 * jnp.log(e0 / s02)
    wpl1 = w01 * jnp.log(e1 / s01) + w12 * jnp.log(e1 / s12)
    wpl2 = w02 * jnp.log(e2 / s02) + w12 * jnp.log(e2 / s12)
    wpl = jnp.stack([wpl0, wpl1, wpl2], axis=1)  # (N, 3)
    picked = jnp.take_along_axis(wpl, y.reshape(-1, 1).astype(jnp.int32), axis=1)
    return -jnp.mean(picked)


if __name__ == "__main__":
    key = jax.random.PRNGKey(0)
    kz, ky, kz2, ky2 = jax.random.split(key, 4)

    weights = (1.0, 1.0, 0.1)

    # Small case (single block), f32.
    N = 16
    z = jax.random.normal(kz, (N, 3), dtype=jnp.float32)
    y = jax.random.randint(ky, (N,), 0, 3, dtype=jnp.int32)
    loss = jax.block_until_ready(wpl_loss(z, y, weights=weights))
    ref = jax.block_until_ready(_reference_wpl_loss(z, y, weights=weights))
    assert jnp.allclose(loss, ref, rtol=1e-5, atol=1e-5), (loss, ref)

    # Small case, bf16 logits (in-kernel f32 upcast path).
    z_bf16 = z.astype(jnp.bfloat16)
    loss_bf = jax.block_until_ready(wpl_loss(z_bf16, y, weights=weights))
    ref_bf = jax.block_until_ready(_reference_wpl_loss(z_bf16, y, weights=weights))
    assert jnp.allclose(loss_bf, ref_bf, rtol=1e-4, atol=1e-4), (loss_bf, ref_bf)

    # Multi-block + ragged-tail case (exercises the masked last block).
    N2 = 10000
    z2 = jax.random.normal(kz2, (N2, 3), dtype=jnp.float32)
    y2 = jax.random.randint(ky2, (N2,), 0, 3, dtype=jnp.int32)
    loss2 = jax.block_until_ready(wpl_loss(z2, y2, weights=weights, block_n=4096))
    ref2 = jax.block_until_ready(_reference_wpl_loss(z2, y2, weights=weights))
    assert jnp.allclose(loss2, ref2, rtol=1e-5, atol=1e-5), (loss2, ref2)

    print("KERNEL_OK")
</pallas_src>

<mosaic_0001>
module attributes {stable_mosaic.version = 11 : i64} {
  func.func @_wpl_kernel(%arg0: i32, %arg1: memref<3x32x128xf32, #tpu.memory_space<vmem>>, %arg2: memref<32x128xi8, #tpu.memory_space<vmem>>, %arg3: memref<1x128xf32, #tpu.memory_space<vmem>>) attributes {dimension_semantics = [#tpu.dimension_semantics<parallel>], iteration_bounds = array<i64: 1>, scalar_prefetch = 0 : i64, scratch_operands = 0 : i64, tpu.core_type = #tpu.core_type<tc>, window_params = [{transform_indices = @transform_0, window_bounds = array<i64: 3, 32, 128>}, {transform_indices = @transform_1, window_bounds = array<i64: 32, 128>}, {transform_indices = @transform_2, window_bounds = array<i64: 1, 128>}]} {
    %c0 = arith.constant 0 : index
    %c0_0 = arith.constant 0 : index
    %c0_1 = arith.constant 0 : index
    %0 = vector.load %arg1[%c0, %c0_0, %c0_1] : memref<3x32x128xf32, #tpu.memory_space<vmem>>, vector<1x32x128xf32>
    %1 = vector.shape_cast %0 : vector<1x32x128xf32> to vector<32x128xf32>
    %c1 = arith.constant 1 : index
    %c0_2 = arith.constant 0 : index
    %c0_3 = arith.constant 0 : index
    %2 = vector.load %arg1[%c1, %c0_2, %c0_3] : memref<3x32x128xf32, #tpu.memory_space<vmem>>, vector<1x32x128xf32>
    %3 = vector.shape_cast %2 : vector<1x32x128xf32> to vector<32x128xf32>
    %c2 = arith.constant 2 : index
    %c0_4 = arith.constant 0 : index
    %c0_5 = arith.constant 0 : index
    %4 = vector.load %arg1[%c2, %c0_4, %c0_5] : memref<3x32x128xf32, #tpu.memory_space<vmem>>, vector<1x32x128xf32>
    %5 = vector.shape_cast %4 : vector<1x32x128xf32> to vector<32x128xf32>
    %c0_6 = arith.constant 0 : index
    %c0_7 = arith.constant 0 : index
    %6 = vector.load %arg2[%c0_6, %c0_7] : memref<32x128xi8, #tpu.memory_space<vmem>>, vector<32x128xi8>
    %7 = arith.extsi %6 : vector<32x128xi8> to vector<32x128xi32>
    %8 = arith.maximumf %1, %3 : vector<32x128xf32>
    %9 = arith.minimumf %1, %3 : vector<32x128xf32>
    %10 = arith.subf %9, %8 : vector<32x128xf32>
    %11 = math.exp %10 : vector<32x128xf32>
    %cst = arith.constant 1.000000e+00 : f32
    %12 = vector.broadcast %cst : f32 to vector<32x128xf32>
    %13 = arith.addf %12, %11 : vector<32x128xf32>
    %14 = math.log %13 : vector<32x128xf32>
    %15 = arith.addf %8, %14 : vector<32x128xf32>
    %16 = arith.maximumf %1, %5 : vector<32x128xf32>
    %17 = arith.minimumf %1, %5 : vector<32x128xf32>
    %18 = arith.subf %17, %16 : vector<32x128xf32>
    %19 = math.exp %18 : vector<32x128xf32>
    %cst_8 = arith.constant 1.000000e+00 : f32
    %20 = vector.broadcast %cst_8 : f32 to vector<32x128xf32>
    %21 = arith.addf %20, %19 : vector<32x128xf32>
    %22 = math.log %21 : vector<32x128xf32>
    %23 = arith.addf %16, %22 : vector<32x128xf32>
    %24 = arith.maximumf %3, %5 : vector<32x128xf32>
    %25 = arith.minimumf %3, %5 : vector<32x128xf32>
    %26 = arith.subf %25, %24 : vector<32x128xf32>
    %27 = math.exp %26 : vector<32x128xf32>
    %cst_9 = arith.constant 1.000000e+00 : f32
    %28 = vector.broadcast %cst_9 : f32 to vector<32x128xf32>
    %29 = arith.addf %28, %27 : vector<32x128xf32>
    %30 = math.log %29 : vector<32x128xf32>
    %31 = arith.addf %24, %30 : vector<32x128xf32>
    %c0_i32 = arith.constant 0 : i32
    %32 = vector.broadcast %c0_i32 : i32 to vector<32x128xi32>
    %33 = arith.cmpi eq, %7, %32 : vector<32x128xi32>
    %c1_i32 = arith.constant 1 : i32
    %34 = vector.broadcast %c1_i32 : i32 to vector<32x128xi32>
    %35 = arith.cmpi eq, %7, %34 : vector<32x128xi32>
    %c1_i32_10 = arith.constant 1 : i32
    %36 = vector.broadcast %c1_i32_10 : i32 to vector<32x128xi32>
    %37 = arith.cmpi sle, %7, %36 : vector<32x128xi32>
    %38 = arith.select %35, %3, %5 : vector<32x128xi1>, vector<32x128xf32>
    %39 = arith.select %33, %1, %38 : vector<32x128xi1>, vector<32x128xf32>
    %40 = arith.select %37, %15, %23 : vector<32x128xi1>, vector<32x128xf32>
    %41 = arith.select %33, %23, %31 : vector<32x128xi1>, vector<32x128xf32>
    %cst_11 = arith.constant 1.000000e+00 : f32
    %cst_12 = arith.constant 1.000000e+00 : f32
    %42 = vector.broadcast %cst_11 : f32 to vector<32x128xf32>
    %43 = vector.broadcast %cst_12 : f32 to vector<32x128xf32>
    %44 = arith.select %37, %42, %43 : vector<32x128xi1>, vector<32x128xf32>
    %cst_13 = arith.constant 1.000000e+00 : f32
    %cst_14 = arith.constant 1.000000e-01 : f32
    %45 = vector.broadcast %cst_13 : f32 to vector<32x128xf32>
    %46 = vector.broadcast %cst_14 : f32 to vector<32x128xf32>
    %47 = arith.select %33, %45, %46 : vector<32x128xi1>, vector<32x128xf32>
    %48 = arith.subf %39, %40 : vector<32x128xf32>
    %49 = arith.mulf %44, %48 : vector<32x128xf32>
    %50 = arith.subf %39, %41 : vector<32x128xf32>
    %51 = arith.mulf %47, %50 : vector<32x128xf32>
    %52 = arith.addf %49, %51 : vector<32x128xf32>
    %cst_15 = arith.constant dense<0.000000e+00> : vector<128xf32>
    %53 = vector.multi_reduction <add>, %52, %cst_15 [0] : vector<32x128xf32> to vector<128xf32>
    %54 = vector.shape_cast %53 : vector<128xf32> to vector<1x128xf32>
    %c0_16 = arith.constant 0 : index
    %c0_17 = arith.constant 0 : index
    %55 = vector.load %arg3[%c0_16, %c0_17] : memref<1x128xf32, #tpu.memory_space<vmem>>, vector<1x128xf32>
    tpu.vector_store %arg3[%c0_16, %c0_17], %54 {strides = array<i32>} : memref<1x128xf32, #tpu.memory_space<vmem>>, vector<1x128xf32>,
    %c0_i32_18 = arith.constant 0 : i32
    %56 = arith.cmpi eq, %arg0, %c0_i32_18 : i32
    %57 = arith.extui %56 : i1 to i32
    %c0_i32_19 = arith.constant 0 : i32
    %58 = arith.cmpi ne, %57, %c0_i32_19 : i32
    scf.if %58 {
      %59 = tpu.iota {dimensions = array<i32: 0>} : vector<32x128xi32>
      %60 = tpu.iota {dimensions = array<i32: 1>} : vector<32x128xi32>
      %c128_i32 = arith.constant 128 : i32
      %61 = vector.broadcast %c128_i32 : i32 to vector<32x128xi32>
      %62 = arith.muli %59, %61 : vector<32x128xi32>
      %63 = arith.addi %62, %60 : vector<32x128xi32>
      %c16_i32 = arith.constant 16 : i32
      %64 = vector.broadcast %c16_i32 : i32 to vector<32x128xi32>
      %65 = arith.cmpi slt, %63, %64 : vector<32x128xi32>
      %cst_20 = arith.constant 0.000000e+00 : f32
      %66 = vector.broadcast %cst_20 : f32 to vector<32x128xf32>
      %67 = arith.select %65, %52, %66 : vector<32x128xi1>, vector<32x128xf32>
      %cst_21 = arith.constant dense<0.000000e+00> : vector<128xf32>
      %68 = vector.multi_reduction <add>, %67, %cst_21 [0] : vector<32x128xf32> to vector<128xf32>
      %69 = vector.shape_cast %68 : vector<128xf32> to vector<1x128xf32>
      %c0_22 = arith.constant 0 : index
      %c0_23 = arith.constant 0 : index
      %70 = vector.load %arg3[%c0_22, %c0_23] : memref<1x128xf32, #tpu.memory_space<vmem>>, vector<1x128xf32>
      tpu.vector_store %arg3[%c0_22, %c0_23], %69 {strides = array<i32>} : memref<1x128xf32, #tpu.memory_space<vmem>>, vector<1x128xf32>,
    } else {
    }
    return
  }
  func.func @transform_0(%arg0: i32) -> (i32, i32, i32) {
    %c0_i32 = arith.constant 0 : i32
    %c0_i32_0 = arith.constant 0 : i32
    %c0_i32_1 = arith.constant 0 : i32
    return %c0_i32, %arg0, %c0_i32_0 : i32, i32, i32
  }
  func.func @transform_1(%arg0: i32) -> (i32, i32) {
    %c0_i32 = arith.constant 0 : i32
    %c0_i32_0 = arith.constant 0 : i32
    return %arg0, %c0_i32 : i32, i32
  }
  func.func @transform_2(%arg0: i32) -> (i32, i32) {
    %c0_i32 = arith.constant 0 : i32
    %c0_i32_0 = arith.constant 0 : i32
    return %c0_i32, %arg0 : i32, i32
  }
}

</mosaic_0001>

<llo_original>
// kernel: _wpl_loss_jit.1
$region0: #{_wpl_loss_jit.1}
  #allocation0 [shape = 'u32[]', space=smem, size = 0x4, offset = 0x4, fixed_abs, tag = 'smem constant byte address 0x4 - core index']
  #allocation1 [shape = 'u32[144,128]{1,0:T(1,128)}', space=vmem, size = 0x12000, scoped, tag = 'internal scratch']
  %s0 = inlined_call_operand.vmem [shape: f32[3,32,128], index: 0, kind: input, shape index: {}]
  %s1 = inlined_call_operand.vmem [shape: s8[32,128], index: 1, kind: input, shape index: {}]
  %s2 = inlined_call_operand.vmem [shape: f32[1,128], index: 2, kind: output, shape index: {}]
  %s3 = sld [smem:[#allocation0]]
  $region22: #{_wpl_loss_jit.1} parent=0
    _
  %s5 = ssub.s32 1, %s3
  %s6 = scalar_select 0, %s5, %s3
  // Predicated region
  $region2: #{_wpl_loss_jit.1} parent=0 // pred_check
    _
  $region3: #{_wpl_loss_jit.1} parent=0 // pred_check_branch
    %8 = sbr.rel (0) target = $region5
  $region4: #{_wpl_loss_jit.1} parent=0 // pred_region
    _
  $region5: #{_wpl_loss_jit.1} parent=0 // pred_fallthru
    _
  // Predicated region
  $region6: #{_wpl_loss_jit.1} parent=0 // pred_check
    _
  $region7: #{_wpl_loss_jit.1} parent=0 // pred_check_branch
    %10 = sbr.rel (0) target = $region9
  $region8: #{_wpl_loss_jit.1} parent=0 // pred_region
    _
  $region9: #{_wpl_loss_jit.1} parent=0 // pred_fallthru
    _
  %v11 = vld [vmem:[%s0] sm:$0xff]
  %v12 = vld [vmem:[%s0 + $0x8] sm:$0xff]
  %v13 = vld [vmem:[%s0 + $0x10] sm:$0xff]
  %v14 = vld [vmem:[%s0 + $0x18] sm:$0xff]
  %s15 = scalar_lea.vmem %s0, 32
  %v16 = vld [vmem:[%s15] sm:$0xff]
  %v17 = vld [vmem:[%s15 + $0x8] sm:$0xff]
  %v18 = vld [vmem:[%s15 + $0x10] sm:$0xff]
  %v19 = vld [vmem:[%s15 + $0x18] sm:$0xff]
  %s20 = scalar_lea.vmem %s0, 64
  %v21 = vld [vmem:[%s20] sm:$0xff]
  %v22 = vld [vmem:[%s20 + $0x8] sm:$0xff]
  %v23 = vld [vmem:[%s20 + $0x10] sm:$0xff]
  %v24 = vld [vmem:[%s20 + $0x18] sm:$0xff]
  %v25 = vld [vmem:[%s1] sm:$0xff]
  %v26 = vunpack.c.0.s8 %v25
  %v27 = vunpack.c.1.s8 %v25
  %v28 = vunpack.c.2.s8 %v25
  %v29 = vunpack.c.3.s8 %v25
  %v30 = vmax.f32 %v11, %v16
  %v31 = vmax.f32 %v12, %v17
  %v32 = vmax.f32 %v13, %v18
  %v33 = vmax.f32 %v14, %v19
  %v34 = vmin.f32 %v11, %v16
  %v35 = vmin.f32 %v12, %v17
  %v36 = vmin.f32 %v13, %v18
  %v37 = vmin.f32 %v14, %v19
  %v38 = vsub.f32 %v34, %v30
  %v39 = vsub.f32 %v35, %v31
  %v40 = vsub.f32 %v36, %v32
  %v41 = vsub.f32 %v37, %v33
  %v42 = vmul.f32 %v38, 1.442695
  %v43 = vpow.pop %v42
  %v44 = vmul.f32 %v39, 1.442695
  %v45 = vpow.pop %v44
  %v46 = vmul.f32 %v40, 1.442695
  %v47 = vpow.pop %v46
  %v48 = vmul.f32 %v41, 1.442695
  %v49 = vpow.pop %v48
  %v50 = vadd.f32 %v43, 1.0
  %v51 = vadd.f32 %v45, 1.0
  %v52 = vadd.f32 %v47, 1.0
  %v53 = vadd.f32 %v49, 1.0
  %v54 = vlog2.pop %v50
  %v55 = vmul.f32 %v54, 0.6931472
  %v56 = vlog2.pop %v51
  %v57 = vmul.f32 %v56, 0.6931472
  %v58 = vlog2.pop %v52
  %v59 = vmul.f32 %v58, 0.6931472
  %v60 = vlog2.pop %v53
  %v61 = vmul.f32 %v60, 0.6931472
  %v62 = vadd.f32 %v30, %v55
  %v63 = vadd.f32 %v31, %v57
  %v64 = vadd.f32 %v32, %v59
  %v65 = vadd.f32 %v33, %v61
  %v66 = vmax.f32 %v11, %v21
  %v67 = vmax.f32 %v12, %v22
  %v68 = vmax.f32 %v13, %v23
  %v69 = vmax.f32 %v14, %v24
  %v70 = vmin.f32 %v11, %v21
  %v71 = vmin.f32 %v12, %v22
  %v72 = vmin.f32 %v13, %v23
  %v73 = vmin.f32 %v14, %v24
  %v74 = vsub.f32 %v70, %v66
  %v75 = vsub.f32 %v71, %v67
  %v76 = vsub.f32 %v72, %v68
  %v77 = vsub.f32 %v73, %v69
  %v78 = vmul.f32 %v74, 1.442695
  %v79 = vpow.pop %v78
  %v80 = vmul.f32 %v75, 1.442695
  %v81 = vpow.pop %v80
  %v82 = vmul.f32 %v76, 1.442695
  %v83 = vpow.pop %v82
  %v84 = vmul.f32 %v77, 1.442695
  %v85 = vpow.pop %v84
  %v86 = vadd.f32 %v79, 1.0
  %v87 = vadd.f32 %v81, 1.0
  %v88 = vadd.f32 %v83, 1.0
  %v89 = vadd.f32 %v85, 1.0
  %v90 = vlog2.pop %v86
  %v91 = vmul.f32 %v90, 0.6931472
  %v92 = vlog2.pop %v87
  %v93 = vmul.f32 %v92, 0.6931472
  %v94 = vlog2.pop %v88
  %v95 = vmul.f32 %v94, 0.6931472
  %v96 = vlog2.pop %v89
  %v97 = vmul.f32 %v96, 0.6931472
  %v98 = vadd.f32 %v66, %v91
  %v99 = vadd.f32 %v67, %v93
  %v100 = vadd.f32 %v68, %v95
  %v101 = vadd.f32 %v69, %v97
  %v102 = vmax.f32 %v16, %v21
  %v103 = vmax.f32 %v17, %v22
  %v104 = vmax.f32 %v18, %v23
  %v105 = vmax.f32 %v19, %v24
  %v106 = vmin.f32 %v16, %v21
  %v107 = vmin.f32 %v17, %v22
  %v108 = vmin.f32 %v18, %v23
  %v109 = vmin.f32 %v19, %v24
  %v110 = vsub.f32 %v106, %v102
  %v111 = vsub.f32 %v107, %v103
  %v112 = vsub.f32 %v108, %v104
  %v113 = vsub.f32 %v109, %v105
  %v114 = vmul.f32 %v110, 1.442695
  %v115 = vpow.pop %v114
  %v116 = vmul.f32 %v111, 1.442695
  %v117 = vpow.pop %v116
  %v118 = vmul.f32 %v112, 1.442695
  %v119 = vpow.pop %v118
  %v120 = vmul.f32 %v113, 1.442695
  %v121 = vpow.pop %v120
  %v122 = vadd.f32 %v115, 1.0
  %v123 = vadd.f32 %v117, 1.0
  %v124 = vadd.f32 %v119, 1.0
  %v125 = vadd.f32 %v121, 1.0
  %v126 = vlog2.pop %v122
  %v127 = vmul.f32 %v126, 0.6931472
  %v128 = vlog2.pop %v123
  %v129 = vmul.f32 %v128, 0.6931472
  %v130 = vlog2.pop %v124
  %v131 = vmul.f32 %v130, 0.6931472
  %v132 = vlog2.pop %v125
  %v133 = vmul.f32 %v132, 0.6931472
  %v134 = vadd.f32 %v102, %v127
  %v135 = vadd.f32 %v103, %v129
  %v136 = vadd.f32 %v104, %v131
  %v137 = vadd.f32 %v105, %v133
  %vm138 = vcmp.eq.s32.totalorder %v26, 0
  %vm139 = vcmp.eq.s32.totalorder %v27, 0
  %vm140 = vcmp.eq.s32.totalorder %v28, 0
  %vm141 = vcmp.eq.s32.totalorder %v29, 0
  %vm142 = vcmp.eq.s32.totalorder %v26, 1
  %vm143 = vcmp.eq.s32.totalorder %v27, 1
  %vm144 = vcmp.eq.s32.totalorder %v28, 1
  %vm145 = vcmp.eq.s32.totalorder %v29, 1
  %vm146 = vcmp.le.s32.totalorder %v26, 1
  %vm147 = vcmp.le.s32.totalorder %v27, 1
  %vm148 = vcmp.le.s32.totalorder %v28, 1
  %vm149 = vcmp.le.s32.totalorder %v29, 1
  %v150 = vsel %vm142, %v16, %v21
  %v151 = vsel %vm143, %v17, %v22
  %v152 = vsel %vm144, %v18, %v23
  %v153 = vsel %vm145, %v19, %v24
  %v154 = vsel %vm138, %v11, %v150
  %v155 = vsel %vm139, %v12, %v151
  %v156 = vsel %vm140, %v13, %v152
  %v157 = vsel %vm141, %v14, %v153
  %v158 = vsel %vm146, %v62, %v98
  %v159 = vsel %vm147, %v63, %v99
  %v160 = vsel %vm148, %v64, %v100
  %v161 = vsel %vm149, %v65, %v101
  %v162 = vsel %vm138, %v98, %v134
  %v163 = vsel %vm139, %v99, %v135
  %v164 = vsel %vm140, %v100, %v136
  %v165 = vsel %vm141, %v101, %v137
  %v166 = vsel %vm138, 1.0, 0.1
  %v167 = vsel %vm139, 1.0, 0.1
  %v168 = vsel %vm140, 1.0, 0.1
  %v169 = vsel %vm141, 1.0, 0.1
  %v170 = vsub.f32 %v154, %v158
  %v171 = vsub.f32 %v155, %v159
  %v172 = vsub.f32 %v156, %v160
  %v173 = vsub.f32 %v157, %v161
  %v174 = vsub.f32 %v154, %v162
  %v175 = vsub.f32 %v155, %v163
  %v176 = vsub.f32 %v156, %v164
  %v177 = vsub.f32 %v157, %v165
  %v178 = vmul.f32 %v166, %v174
  %v179 = vmul.f32 %v167, %v175
  %v180 = vmul.f32 %v168, %v176
  %v181 = vmul.f32 %v169, %v177
  %v182 = vadd.f32 %v170, %v178
  %v183 = vadd.f32 %v171, %v179
  %v184 = vadd.f32 %v172, %v180
  %v185 = vadd.f32 %v173, %v181
  %v186 = vadd.f32 %v182, %v183
  %v187 = vadd.f32 %v186, %v184
  %v188 = vadd.f32 %v187, %v185
  %v189 = vrot.slane %v188, 4
  %v190 = vadd.f32 %v188, %v189
  %v191 = vrot.slane %v190, 2
  %v192 = vadd.f32 %v190, %v191
  %v193 = vrot.slane %v192, 1
  %v194 = vadd.f32 %v192, %v193
  %195 = vst [vmem:[%s2] sm:$0x1] %v194
  %p196 = scmp.eq.s32.totalorder 0, 0
  // Predicated region
  $region10: #{_wpl_loss_jit.1} parent=0 // pred_check
    %p197 = pneg %p196
  $region11: #{_wpl_loss_jit.1} parent=0 // pred_check_branch
    %199 = sbr.rel (%p197) target = $region13
  $region12: #{_wpl_loss_jit.1} parent=0 // pred_region
    %v200 = vlaneseq
    %v201 = vshrl.u32 %v200, 7
    %v202 = vadd.s32 %v201, 8
    %v203 = vadd.s32 %v201, 16
    %v204 = vadd.s32 %v201, 24
    %v205 = vlaneseq
    %v206 = vand.u32 %v205, 127
    %v207 = vmul.u32 %v201, 128
    %v208 = vmul.u32 %v202, 128
    %v209 = vmul.u32 %v203, 128
    %v210 = vmul.u32 %v204, 128
    %v211 = vadd.s32 %v207, %v206
    %v212 = vadd.s32 %v208, %v206
    %v213 = vadd.s32 %v209, %v206
    %v214 = vadd.s32 %v210, %v206
    %vm215 = vcmp.lt.s32.totalorder %v211, 16
    %vm216 = vcmp.lt.s32.totalorder %v212, 16
    %vm217 = vcmp.lt.s32.totalorder %v213, 16
    %vm218 = vcmp.lt.s32.totalorder %v214, 16
    %v219 = vsel %vm215, %v182, 0.0
    %v220 = vsel %vm216, %v183, 0.0
    %v221 = vsel %vm217, %v184, 0.0
    %v222 = vsel %vm218, %v185, 0.0
    %v223 = vadd.f32 %v219, %v220
    %v224 = vadd.f32 %v223, %v221
    %v225 = vadd.f32 %v224, %v222
    %v226 = vrot.slane %v225, 4
    %v227 = vadd.f32 %v225, %v226
    %v228 = vrot.slane %v227, 2
    %v229 = vadd.f32 %v227, %v228
    %v230 = vrot.slane %v229, 1
    %v231 = vadd.f32 %v229, %v230
    %232 = vst [vmem:[%s2] sm:$0x1] %v231
  $region13: #{_wpl_loss_jit.1} parent=0 // pred_fallthru
    _
  // Predicated region
  $region14: #{_wpl_loss_jit.1} parent=0 // pred_check
    _
  $region15: #{_wpl_loss_jit.1} parent=0 // pred_check_branch
    %234 = sbr.rel (0) target = $region17
  $region16: #{_wpl_loss_jit.1} parent=0 // pred_region
    _
  $region17: #{_wpl_loss_jit.1} parent=0 // pred_fallthru
    _
  // Predicated region
  $region18: #{_wpl_loss_jit.1} parent=0 // pred_check
    _
  $region19: #{_wpl_loss_jit.1} parent=0 // pred_check_branch
    %236 = sbr.rel (0) target = $region21
  $region20: #{_wpl_loss_jit.1} parent=0 // pred_region
    _
  $region21: #{_wpl_loss_jit.1} parent=0 // pred_fallthru
    _

</llo_original>
